<compile_context>
chip_gen: v5e
topology: v5e:2x2
jax: 0.10.0
libtpu: 0.0.40
codegen_flags: <defaults>
</compile_context>

<pallas_src>
import functools

import jax
import jax.numpy as jnp
from jax.experimental import pallas as pl
from jax.experimental.pallas import tpu as pltpu


def _round_up(n, m):
    return ((n + m - 1) // m) * m


def _cdiv(a, b):
    return -(-a // b)


def _mlp_policy_kernel(x_ref, w1_ref, b1_ref, w2_ref, b2_ref, out_ref, *, num_action):
    """One batch tile of ReinforceModel.forward:
         h      = relu(x @ W1 + b1)
         logits = h @ W2p + b2p          (lane-padded to a 128 multiple)
         probs  = softmax(logits)        (exact division)
         action = first-argmax per row   (np.argmax tie-break)
       Output block is transposed & compact: (out_rows, tb) with rows
       [0, num_action) = probs, row num_action = action index as float32."""
    x = x_ref[...]                                               # (tb, num_input) f32
    w1 = w1_ref[...]                                             # (num_input, 64)
    b1 = b1_ref[...]                                             # (1, 64)
    w2 = w2_ref[...]                                             # (64, out_lanes) zero-padded cols
    b2 = b2_ref[...]                                             # (1, out_lanes)  -1e30 on pad lanes

    # layer1 + ReLU (MXU, f32 accumulation)
    h = jnp.maximum(jnp.dot(x, w1, preferred_element_type=jnp.float32) + b1, 0.0)

    # layer2 in padded lane space: pad lanes get logit -1e30 (finite in f32) so
    # exp() underflows to 0 and softmax/argmax over out_lanes equal those over
    # the real num_action lanes.
    logits = jnp.dot(h, w2, preferred_element_type=jnp.float32) + b2   # (tb, out_lanes)

    # numerically stable softmax along lanes -- exact divide so probs sum to 1
    # (kernel is DMA-bound; the precise divide is free under the output writeback).
    m = jnp.max(logits, axis=-1, keepdims=True)
    e = jnp.exp(logits - m)
    denom = jnp.sum(e, axis=-1, keepdims=True)
    probs = e / denom                                            # pad lanes stay exactly 0

    # argmax (first max index, matching np.argmax tie-break); reuse m from softmax
    out_lanes = logits.shape[-1]
    col = jax.lax.broadcasted_iota(jnp.int32, logits.shape, 1)
    is_max = logits == m
    idx = jnp.min(jnp.where(is_max, col, out_lanes), axis=-1, keepdims=True)   # (tb, 1)
    action_f = idx.astype(jnp.float32)                           # exact for small ints

    # pack the action index into lane `num_action`, transpose to the compact
    # (rows, batch) layout, and emit only the meaningful sublanes.
    packed = jnp.where(col == num_action, action_f, probs)       # (tb, out_lanes)
    out_rows = out_ref.shape[0]
    out_ref[...] = packed.T[:out_rows, :]                        # (out_rows, tb) lane-dense store


def prepare_params(w1, b1, w2, b2):
    """One-time parameter prep (hoisted out of the per-call path):
    cast to f32, reshape biases to 2D, lane-pad layer 2 to a 128 multiple."""
    num_input, hidden = w1.shape
    num_action = w2.shape[1]
    out_lanes = _round_up(num_action + 1, 128)   # probs lanes + 1 action lane, lane-dense
    out_rows = _round_up(num_action + 1, 8)      # compact transposed output sublanes
    pad_cols = out_lanes - num_action

    w1_f = w1.astype(jnp.float32)
    b1_2d = b1.astype(jnp.float32).reshape(1, hidden)
    w2_pad = jnp.pad(w2.astype(jnp.float32), ((0, 0), (0, pad_cols)))
    # -1e30 is finite in f32 (exp -> 0); do NOT narrow these params to bf16/f16.
    b2_pad = jnp.pad(b2.astype(jnp.float32).reshape(1, -1), ((0, 0), (0, pad_cols)),
                     constant_values=-1e30)
    return {
        "w1": w1_f, "b1": b1_2d, "w2": w2_pad, "b2": b2_pad,
        "num_input": num_input, "hidden": hidden, "num_action": num_action,
        "out_rows": out_rows, "out_lanes": out_lanes,
    }


def reinforce_forward(x, params, *, block_b=1024):
    """Pallas implementation of ReinforceModel.forward (batched inference).

    x: (B, num_input) float32; params from prepare_params().
    Returns (probs (B, num_action) f32, action (B,) int32).
    """
    B, num_input = x.shape
    hidden = params["hidden"]
    num_action = params["num_action"]
    out_rows = params["out_rows"]
    out_lanes = params["out_lanes"]
    assert num_input == params["num_input"]

    # Batch tile: multiple of 128 (it is the *lane* axis of the transposed output,
    # so multiples of 128 keep stores unmasked). Guarantee >=2 grid steps for
    # mid-size B so v7x's two TensorCores both get work; cap at block_b to keep
    # step count up for pipelining on huge B. VMEM use is a few MiB at most.
    block_b = _round_up(block_b, 128)
    b_lanes = _round_up(B, 128)
    if b_lanes <= 128:
        tb = 128
    elif b_lanes <= 2 * block_b:
        tb = _round_up(_cdiv(b_lanes, 2), 128)
    else:
        tb = block_b
    b_padded = _round_up(B, tb)

    x = x.astype(jnp.float32)
    if b_padded != B:
        x = jnp.pad(x, ((0, b_padded - B), (0, 0)))   # only when B isn't a tile multiple

    grid = (b_padded // tb,)

    cost = pl.CostEstimate(
        flops=2 * b_padded * (num_input * hidden + hidden * out_lanes),
        transcendentals=b_padded * out_lanes,
        bytes_accessed=(b_padded * num_input * 4
                        + (num_input * hidden + hidden + hidden * out_lanes + out_lanes) * 4
                        + out_rows * b_padded * 4),
    )

    out = pl.pallas_call(
        functools.partial(_mlp_policy_kernel, num_action=num_action),
        grid=grid,
        in_specs=[
            pl.BlockSpec((tb, num_input), lambda i: (i, 0)),          # x tile (pipelined)
            pl.BlockSpec((num_input, hidden), lambda i: (0, 0)),      # W1 (VMEM-resident)
            pl.BlockSpec((1, hidden), lambda i: (0, 0)),              # b1
            pl.BlockSpec((hidden, out_lanes), lambda i: (0, 0)),      # W2 padded
            pl.BlockSpec((1, out_lanes), lambda i: (0, 0)),           # b2 padded
        ],
        # Compact transposed output: batch on the lane axis -> ~16x less HBM
        # write traffic than a (B, 128) f32 slab, still lane-dense/unmasked.
        out_specs=pl.BlockSpec((out_rows, tb), lambda i: (0, i)),
        out_shape=jax.ShapeDtypeStruct((out_rows, b_padded), jnp.float32),
        compiler_params=pltpu.CompilerParams(
            dimension_semantics=("parallel",),                        # megacore split on v7x
        ),
        cost_estimate=cost,
    )(x, params["w1"], params["b1"], params["w2"], params["b2"])

    probs = out[:num_action, :B].T                       # (B, num_action)
    action = out[num_action, :B].astype(jnp.int32)       # float lane holds exact small int
    return probs, action


def init_params(key, num_input, num_action, hidden=64):
    """Deterministic synthetic init (PyTorch Linear-like uniform fan-in bound)."""
    k1, k2, k3, k4 = jax.random.split(key, 4)
    bound1 = 1.0 / jnp.sqrt(num_input)
    bound2 = 1.0 / jnp.sqrt(hidden)
    w1 = jax.random.uniform(k1, (num_input, hidden), jnp.float32, -bound1, bound1)
    b1 = jax.random.uniform(k2, (hidden,), jnp.float32, -bound1, bound1)
    w2 = jax.random.uniform(k3, (hidden, num_action), jnp.float32, -bound2, bound2)
    b2 = jax.random.uniform(k4, (num_action,), jnp.float32, -bound2, bound2)
    return w1, b1, w2, b2


if __name__ == "__main__":
    # Small CartPole-like shapes: num_input=4 observations, num_action=2, batch=2.
    num_input, num_action, batch = 4, 2, 2

    key = jax.random.PRNGKey(0)
    kx, kp = jax.random.split(key)
    x = jax.random.normal(kx, (batch, num_input), dtype=jnp.float32)
    w1, b1, w2, b2 = init_params(kp, num_input, num_action)

    params = prepare_params(w1, b1, w2, b2)   # one-time, outside the RL hot loop
    probs, action = reinforce_forward(x, params)
    jax.block_until_ready((probs, action))

    # Reference check in plain JAX (same semantics as the PyTorch forward).
    h_ref = jnp.maximum(x @ w1 + b1, 0.0)
    logits_ref = h_ref @ w2 + b2
    probs_ref = jax.nn.softmax(logits_ref, axis=-1)
    action_ref = jnp.argmax(logits_ref, axis=-1).astype(jnp.int32)

    assert probs.shape == (batch, num_action) and action.shape == (batch,)
    assert jnp.allclose(probs, probs_ref, atol=1e-5), "softmax probs mismatch"
    assert jnp.allclose(jnp.sum(probs, axis=-1), 1.0, atol=1e-5), "probs not normalized"
    assert jnp.all(action == action_ref), "argmax action mismatch"

    # For a single observation (PyTorch forward returns a python int):
    single_action = int(action[0])
    _ = single_action

    # TODO(synk): get_action()'s np.random.choice sampling and train_forward's
    # log-prob/autograd path are host-side RL-loop logic, not part of forward().

    print("KERNEL_OK")
</pallas_src>

<mosaic_0001>
module attributes {stable_mosaic.version = 11 : i64} {
  func.func @_mlp_policy_kernel(%arg0: i32, %arg1: memref<128x4xf32, #tpu.memory_space<vmem>>, %arg2: memref<4x64xf32, #tpu.memory_space<vmem>>, %arg3: memref<1x64xf32, #tpu.memory_space<vmem>>, %arg4: memref<64x128xf32, #tpu.memory_space<vmem>>, %arg5: memref<1x128xf32, #tpu.memory_space<vmem>>, %arg6: memref<8x128xf32, #tpu.memory_space<vmem>>) attributes {dimension_semantics = [#tpu.dimension_semantics<parallel>], iteration_bounds = array<i64: 1>, scalar_prefetch = 0 : i64, scratch_operands = 0 : i64, tpu.core_type = #tpu.core_type<tc>, window_params = [{transform_indices = @transform_0, window_bounds = array<i64: 128, 4>}, {pipeline_mode = #tpu.pipeline_mode<synchronous>, transform_indices = @transform_1, window_bounds = array<i64: 4, 64>}, {pipeline_mode = #tpu.pipeline_mode<synchronous>, transform_indices = @transform_2, window_bounds = array<i64: 1, 64>}, {pipeline_mode = #tpu.pipeline_mode<synchronous>, transform_indices = @transform_3, window_bounds = array<i64: 64, 128>}, {pipeline_mode = #tpu.pipeline_mode<synchronous>, transform_indices = @transform_4, window_bounds = array<i64: 1, 128>}, {transform_indices = @transform_5, window_bounds = array<i64: 8, 128>}]} {
    %c0 = arith.constant 0 : index
    %c0_0 = arith.constant 0 : index
    %0 = vector.load %arg1[%c0, %c0_0] : memref<128x4xf32, #tpu.memory_space<vmem>>, vector<128x4xf32>
    %c0_1 = arith.constant 0 : index
    %c0_2 = arith.constant 0 : index
    %1 = vector.load %arg2[%c0_1, %c0_2] : memref<4x64xf32, #tpu.memory_space<vmem>>, vector<4x64xf32>
    %c0_3 = arith.constant 0 : index
    %c0_4 = arith.constant 0 : index
    %2 = vector.load %arg3[%c0_3, %c0_4] : memref<1x64xf32, #tpu.memory_space<vmem>>, vector<1x64xf32>
    %c0_5 = arith.constant 0 : index
    %c0_6 = arith.constant 0 : index
    %3 = vector.load %arg4[%c0_5, %c0_6] : memref<64x128xf32, #tpu.memory_space<vmem>>, vector<64x128xf32>
    %c0_7 = arith.constant 0 : index
    %c0_8 = arith.constant 0 : index
    %4 = vector.load %arg5[%c0_7, %c0_8] : memref<1x128xf32, #tpu.memory_space<vmem>>, vector<1x128xf32>
    %cst = arith.constant dense<0.000000e+00> : vector<128x64xf32>
    %5 = tpu.matmul %0, %1, %cst {dimension_numbers = #tpu.dot_dimension_numbers<[1], [0], [0], [1], [0, 0, 1, 1], [], []>} : vector<128x4xf32>, vector<4x64xf32>, vector<128x64xf32> -> vector<128x64xf32>
    %6 = vector.broadcast %2 : vector<1x64xf32> to vector<128x64xf32>
    %7 = arith.addf %5, %6 : vector<128x64xf32>
    %cst_9 = arith.constant 0.000000e+00 : f32
    %8 = vector.broadcast %cst_9 : f32 to vector<128x64xf32>
    %9 = arith.maximumf %7, %8 : vector<128x64xf32>
    %cst_10 = arith.constant dense<0.000000e+00> : vector<128x128xf32>
    %10 = tpu.matmul %9, %3, %cst_10 {dimension_numbers = #tpu.dot_dimension_numbers<[1], [0], [0], [1], [0, 0, 1, 1], [], []>} : vector<128x64xf32>, vector<64x128xf32>, vector<128x128xf32> -> vector<128x128xf32>
    %11 = vector.broadcast %4 : vector<1x128xf32> to vector<128x128xf32>
    %12 = arith.addf %10, %11 : vector<128x128xf32>
    %cst_11 = arith.constant dense<0xFF800000> : vector<128xf32>
    %13 = vector.multi_reduction <maximumf>, %12, %cst_11 [1] : vector<128x128xf32> to vector<128xf32>
    %14 = vector.shape_cast %13 : vector<128xf32> to vector<128x1xf32>
    %15 = vector.broadcast %14 : vector<128x1xf32> to vector<128x128xf32>
    %16 = arith.subf %12, %15 : vector<128x128xf32>
    %17 = math.exp %16 : vector<128x128xf32>
    %cst_12 = arith.constant dense<0.000000e+00> : vector<128xf32>
    %18 = vector.multi_reduction <add>, %17, %cst_12 [1] : vector<128x128xf32> to vector<128xf32>
    %19 = vector.shape_cast %18 : vector<128xf32> to vector<128x1xf32>
    %20 = vector.broadcast %19 : vector<128x1xf32> to vector<128x128xf32>
    %21 = arith.divf %17, %20 : vector<128x128xf32>
    %22 = tpu.iota {dimensions = array<i32: 1>} : vector<128x128xi32>
    %23 = vector.broadcast %14 : vector<128x1xf32> to vector<128x128xf32>
    %24 = arith.cmpf oeq, %12, %23 : vector<128x128xf32>
    %c128_i32 = arith.constant 128 : i32
    %25 = vector.broadcast %c128_i32 : i32 to vector<128x128xi32>
    %26 = arith.select %24, %22, %25 : vector<128x128xi1>, vector<128x128xi32>
    %cst_13 = arith.constant dense<2147483647> : vector<128xi32>
    %27 = vector.multi_reduction <minsi>, %26, %cst_13 [1] : vector<128x128xi32> to vector<128xi32>
    %28 = vector.shape_cast %27 : vector<128xi32> to vector<128x1xi32>
    %29 = arith.sitofp %28 : vector<128x1xi32> to vector<128x1xf32>
    %c2_i32 = arith.constant 2 : i32
    %30 = vector.broadcast %c2_i32 : i32 to vector<128x128xi32>
    %31 = arith.cmpi eq, %22, %30 : vector<128x128xi32>
    %32 = vector.shape_cast %29 : vector<128x1xf32> to vector<128x1xf32>
    %33 = vector.broadcast %32 : vector<128x1xf32> to vector<128x128xf32>
    %34 = arith.select %31, %33, %21 : vector<128x128xi1>, vector<128x128xf32>
    %35 = tpu.transpose %34, [1, 0] : vector<128x128xf32> -> vector<128x128xf32>
    %36 = vector.extract_strided_slice %35 {offsets = [0, 0], sizes = [8, 128], strides = [1, 1]} : vector<128x128xf32> to vector<8x128xf32>
    %c0_14 = arith.constant 0 : index
    %c0_15 = arith.constant 0 : index
    %37 = vector.load %arg6[%c0_14, %c0_15] : memref<8x128xf32, #tpu.memory_space<vmem>>, vector<8x128xf32>
    tpu.vector_store %arg6[%c0_14, %c0_15], %36 {strides = array<i32>} : memref<8x128xf32, #tpu.memory_space<vmem>>, vector<8x128xf32>,
    return
  }
  func.func @transform_0(%arg0: i32) -> (i32, i32) {
    %c0_i32 = arith.constant 0 : i32
    %c0_i32_0 = arith.constant 0 : i32
    return %arg0, %c0_i32 : i32, i32
  }
  func.func @transform_1(%arg0: i32) -> (i32, i32) {
    %c0_i32 = arith.constant 0 : i32
    %c0_i32_0 = arith.constant 0 : i32
    %c0_i32_1 = arith.constant 0 : i32
    return %c0_i32, %c0_i32_0 : i32, i32
  }
  func.func @transform_2(%arg0: i32) -> (i32, i32) {
    %c0_i32 = arith.constant 0 : i32
    %c0_i32_0 = arith.constant 0 : i32
    %c0_i32_1 = arith.constant 0 : i32
    return %c0_i32, %c0_i32_0 : i32, i32
  }
  func.func @transform_3(%arg0: i32) -> (i32, i32) {
    %c0_i32 = arith.constant 0 : i32
    %c0_i32_0 = arith.constant 0 : i32
    %c0_i32_1 = arith.constant 0 : i32
    return %c0_i32, %c0_i32_0 : i32, i32
  }
  func.func @transform_4(%arg0: i32) -> (i32, i32) {
    %c0_i32 = arith.constant 0 : i32
    %c0_i32_0 = arith.constant 0 : i32
    %c0_i32_1 = arith.constant 0 : i32
    return %c0_i32, %c0_i32_0 : i32, i32
  }
  func.func @transform_5(%arg0: i32) -> (i32, i32) {
    %c0_i32 = arith.constant 0 : i32
    %c0_i32_0 = arith.constant 0 : i32
    return %c0_i32, %arg0 : i32, i32
  }
}

</mosaic_0001>

<llo_original>
// kernel: tpu_custom_call.1
$region0: #{tpu_custom_call.1}
  #allocation0 [shape = 'u32[]', space=smem, size = 0x4, offset = 0x4, fixed_abs, tag = 'smem constant byte address 0x4 - core index']
  #allocation1 [shape = 'u32[72,128]{1,0:T(1,128)}', space=vmem, size = 0x9000, scoped, tag = 'internal scratch']
  %s0 = inlined_call_operand.vmem [shape: f32[128,4], index: 0, kind: input, shape index: {}]
  %s1 = inlined_call_operand.vmem [shape: f32[4,64], index: 1, kind: input, shape index: {}]
  %s2 = inlined_call_operand.vmem [shape: f32[1,64], index: 2, kind: input, shape index: {}]
  %s3 = inlined_call_operand.vmem [shape: f32[64,128], index: 3, kind: input, shape index: {}]
  %s4 = inlined_call_operand.vmem [shape: f32[1,128], index: 4, kind: input, shape index: {}]
  %s5 = inlined_call_operand.hbm [shape: f32[8,128], index: 5, kind: output, shape index: {}]
  %s6 = sld [smem:[#allocation0]]
  $region30: #{tpu_custom_call.1} parent=0
    _
  %s8 = ssub.s32 1, %s6
  %s9 = scalar_select 0, %s8, %s6
  $region1: #{tpu_custom_call.1} parent=0
    #allocation2 [shape = 'u8[4096]{0}', space=vmem, size = 0x1000, scoped, tag = 'output window, operand 0, single buffered']
    #allocation3 [shape = 's32[1]{0}', space=sflag, size = 0x4, scoped, tag = 'scoped memory for tpu_custom_call.1']
    %10 = vsyncpa [#allocation3], 0
    // Predicated region
    $region2: #{tpu_custom_call.1} parent=1 // pred_check
      _
    $region3: #{tpu_custom_call.1} parent=1 // pred_check_branch
      %12 = sbr.rel (0) target = $region5
    $region4: #{tpu_custom_call.1} parent=1 // pred_region
      _
    $region5: #{tpu_custom_call.1} parent=1 // pred_fallthru
      _
    // Predicated region
    $region6: #{tpu_custom_call.1} parent=1 // pred_check
      _
    $region7: #{tpu_custom_call.1} parent=1 // pred_check_branch
      %14 = sbr.rel (0) target = $region9
    $region8: #{tpu_custom_call.1} parent=1 // pred_region
      _
    $region9: #{tpu_custom_call.1} parent=1 // pred_fallthru
      _
    // Predicated region
    $region10: #{tpu_custom_call.1} parent=1 // pred_check
      _
    $region11: #{tpu_custom_call.1} parent=1 // pred_check_branch
      %16 = sbr.rel (0) target = $region13
    $region12: #{tpu_custom_call.1} parent=1 // pred_region
      _
    $region13: #{tpu_custom_call.1} parent=1 // pred_fallthru
      _
    // Predicated region
    $region14: #{tpu_custom_call.1} parent=1 // pred_check
      _
    $region15: #{tpu_custom_call.1} parent=1 // pred_check_branch
      %18 = sbr.rel (0) target = $region17
    $region16: #{tpu_custom_call.1} parent=1 // pred_region
      _
    $region17: #{tpu_custom_call.1} parent=1 // pred_fallthru
      _
    // Predicated region
    $region18: #{tpu_custom_call.1} parent=1 // pred_check
      _
    $region19: #{tpu_custom_call.1} parent=1 // pred_check_branch
      %20 = sbr.rel (0) target = $region21
    $region20: #{tpu_custom_call.1} parent=1 // pred_region
      _
    $region21: #{tpu_custom_call.1} parent=1 // pred_fallthru
      _
    %v21 = vld [vmem:[%s0] sm:$0xff]
    %v22 = vld [vmem:[%s0 + $0x8] sm:$0xff]
    %v23 = vld [vmem:[%s0 + $0x10] sm:$0xff]
    %v24 = vld [vmem:[%s0 + $0x18] sm:$0xff]
    %v25 = vld [vmem:[%s0 + $0x20] sm:$0xff]
    %v26 = vld [vmem:[%s0 + $0x28] sm:$0xff]
    %v27 = vld [vmem:[%s0 + $0x30] sm:$0xff]
    %v28 = vld [vmem:[%s0 + $0x38] sm:$0xff]
    %v29 = vld [vmem:[%s0 + $0x40] sm:$0xff]
    %v30 = vld [vmem:[%s0 + $0x48] sm:$0xff]
    %v31 = vld [vmem:[%s0 + $0x50] sm:$0xff]
    %v32 = vld [vmem:[%s0 + $0x58] sm:$0xff]
    %v33 = vld [vmem:[%s0 + $0x60] sm:$0xff]
    %v34 = vld [vmem:[%s0 + $0x68] sm:$0xff]
    %v35 = vld [vmem:[%s0 + $0x70] sm:$0xff]
    %v36 = vld [vmem:[%s0 + $0x78] sm:$0xff]
    %v37 = vld [vmem:[%s1] sm:$0xf]
    %v38 = vld [vmem:[%s2] sm:$0x1]
    %v39 = vld [vmem:[%s3] sm:$0xff]
    %v40 = vld [vmem:[%s3 + $0x8] sm:$0xff]
    %v41 = vld [vmem:[%s3 + $0x10] sm:$0xff]
    %v42 = vld [vmem:[%s3 + $0x18] sm:$0xff]
    %v43 = vld [vmem:[%s3 + $0x20] sm:$0xff]
    %v44 = vld [vmem:[%s3 + $0x28] sm:$0xff]
    %v45 = vld [vmem:[%s3 + $0x30] sm:$0xff]
    %v46 = vld [vmem:[%s3 + $0x38] sm:$0xff]
    %v47 = vld [vmem:[%s4] sm:$0x1]
    %v49 = vperm.slane %v38, 0
    %vm51 = vcmask 31744
    %v53 = vsel %vm51, %v21, 0
    %v56 = vsel %vm51, %v22, 0
    %v59 = vsel %vm51, %v23, 0
    %v62 = vsel %vm51, %v24, 0
    %v65 = vsel %vm51, %v25, 0
    %v68 = vsel %vm51, %v26, 0
    %v71 = vsel %vm51, %v27, 0
    %v74 = vsel %vm51, %v28, 0
    %v77 = vsel %vm51, %v29, 0
    %v80 = vsel %vm51, %v30, 0
    %v83 = vsel %vm51, %v31, 0
    %v86 = vsel %vm51, %v32, 0
    %v89 = vsel %vm51, %v33, 0
    %v92 = vsel %vm51, %v34, 0
    %v95 = vsel %vm51, %v35, 0
    %v98 = vsel %vm51, %v36, 0
    %vm100 = vcmask 1043456
    %v102 = vsel %vm100, %v37, 0
    %104 = vmatpush.msra.mxu0 0.0
    %105 = vmatpush.msra.mxu0 0.0
    %106 = vmatpush.msra.mxu0 0.0
    %107 = vmatpush.msra.mxu0 0.0
    %108 = vmatpush.msra.mxu0 0.0
    %109 = vmatpush.msra.mxu0 0.0
    %110 = vmatpush.msra.mxu0 0.0
    %111 = vmatpush.msra.mxu0 0.0
    %112 = vmatpush.msra.mxu0 0.0
    %113 = vmatpush.msra.mxu0 0.0
    %114 = vmatpush.msra.mxu0 0.0
    %115 = vmatpush.msra.mxu0 0.0
    %116 = vmatpush.msra.mxu0 0.0
    %117 = vmatpush.msra.mxu0 0.0
    %118 = vmatpush.msra.mxu0 0.0
    %119 = vmatpush.msra.mxu0 %v102
    %120 = vmatmul.f32.gmra.mxu0 %v53
    %v121 = vpop.f32.mrf.mxu0
    %v122 = vadd.f32 %v49, %v121
    %123 = vmatmul.f32.gmra.mxu0 %v56
    %v124 = vpop.f32.mrf.mxu0
    %v125 = vadd.f32 %v49, %v124
    %126 = vmatmul.f32.gmra.mxu0 %v59
    %v127 = vpop.f32.mrf.mxu0
    %v128 = vadd.f32 %v49, %v127
    %129 = vmatmul.f32.gmra.mxu0 %v62
    %v130 = vpop.f32.mrf.mxu0
    %v131 = vadd.f32 %v49, %v130
    %132 = vmatmul.f32.gmra.mxu0 %v65
    %v133 = vpop.f32.mrf.mxu0
    %v134 = vadd.f32 %v49, %v133
    %135 = vmatmul.f32.gmra.mxu0 %v68
    %v136 = vpop.f32.mrf.mxu0
    %v137 = vadd.f32 %v49, %v136
    %138 = vmatmul.f32.gmra.mxu0 %v71
    %v139 = vpop.f32.mrf.mxu0
    %v140 = vadd.f32 %v49, %v139
    %141 = vmatmul.f32.gmra.mxu0 %v74
    %v142 = vpop.f32.mrf.mxu0
    %v143 = vadd.f32 %v49, %v142
    %144 = vmatmul.f32.gmra.mxu0 %v77
    %v145 = vpop.f32.mrf.mxu0
    %v146 = vadd.f32 %v49, %v145
    %147 = vmatmul.f32.gmra.mxu0 %v80
    %v148 = vpop.f32.mrf.mxu0
    %v149 = vadd.f32 %v49, %v148
    %150 = vmatmul.f32.gmra.mxu0 %v83
    %v151 = vpop.f32.mrf.mxu0
    %v152 = vadd.f32 %v49, %v151
    %153 = vmatmul.f32.gmra.mxu0 %v86
    %v154 = vpop.f32.mrf.mxu0
    %v155 = vadd.f32 %v49, %v154
    %156 = vmatmul.f32.gmra.mxu0 %v89
    %v157 = vpop.f32.mrf.mxu0
    %v158 = vadd.f32 %v49, %v157
    %159 = vmatmul.f32.gmra.mxu0 %v92
    %v160 = vpop.f32.mrf.mxu0
    %v161 = vadd.f32 %v49, %v160
    %162 = vmatmul.f32.gmra.mxu0 %v95
    %v163 = vpop.f32.mrf.mxu0
    %v164 = vadd.f32 %v49, %v163
    %165 = vmatmul.f32.gmra.mxu0 %v98
    %v166 = vpop.f32.mrf.mxu0
    %v167 = vadd.f32 %v49, %v166
    %168 = vdwg.mxu0
    %v169 = vmax.f32 %v122, 0.0
    %v170 = vmax.f32 %v125, 0.0
    %v171 = vmax.f32 %v128, 0.0
    %v172 = vmax.f32 %v131, 0.0
    %v173 = vmax.f32 %v134, 0.0
    %v174 = vmax.f32 %v137, 0.0
    %v175 = vmax.f32 %v140, 0.0
    %v176 = vmax.f32 %v143, 0.0
    %v177 = vmax.f32 %v146, 0.0
    %v178 = vmax.f32 %v149, 0.0
    %v179 = vmax.f32 %v152, 0.0
    %v180 = vmax.f32 %v155, 0.0
    %v181 = vmax.f32 %v158, 0.0
    %v182 = vmax.f32 %v161, 0.0
    %v183 = vmax.f32 %v164, 0.0
    %v184 = vmax.f32 %v167, 0.0
    %v186 = vperm.slane %v47, 0
    %vm188 = vcmask 523264
    %v190 = vsel %vm188, %v169, 0
    %v193 = vsel %vm188, %v170, 0
    %v196 = vsel %vm188, %v171, 0
    %v199 = vsel %vm188, %v172, 0
    %v202 = vsel %vm188, %v173, 0
    %v205 = vsel %vm188, %v174, 0
    %v208 = vsel %vm188, %v175, 0
    %v211 = vsel %vm188, %v176, 0
    %v214 = vsel %vm188, %v177, 0
    %v217 = vsel %vm188, %v178, 0
    %v220 = vsel %vm188, %v179, 0
    %v223 = vsel %vm188, %v180, 0
    %v226 = vsel %vm188, %v181, 0
    %v229 = vsel %vm188, %v182, 0
    %v232 = vsel %vm188, %v183, 0
    %v235 = vsel %vm188, %v184, 0
    %237 = vmatpush.msra.mxu0 0.0
    %238 = vmatpush.msra.mxu0 0.0
    %239 = vmatpush.msra.mxu0 0.0
    %240 = vmatpush.msra.mxu0 0.0
    %241 = vmatpush.msra.mxu0 0.0
    %242 = vmatpush.msra.mxu0 0.0
    %243 = vmatpush.msra.mxu0 0.0
    %244 = vmatpush.msra.mxu0 0.0
    %245 = vmatpush.msra.mxu0 %v46
    %246 = vmatpush.msra.mxu0 %v45
    %247 = vmatpush.msra.mxu0 %v44
    %248 = vmatpush.msra.mxu0 %v43
    %249 = vmatpush.msra.mxu0 %v42
    %250 = vmatpush.msra.mxu0 %v41
    %251 = vmatpush.msra.mxu0 %v40
    %252 = vmatpush.msra.mxu0 %v39
    %253 = vmatmul.f32.gmra.mxu0 %v190
    %v254 = vpop.f32.mrf.mxu0
    %v255 = vadd.f32 %v186, %v254
    %256 = vmatmul.f32.gmra.mxu0 %v193
    %v257 = vpop.f32.mrf.mxu0
    %v258 = vadd.f32 %v186, %v257
    %259 = vmatmul.f32.gmra.mxu0 %v196
    %v260 = vpop.f32.mrf.mxu0
    %v261 = vadd.f32 %v186, %v260
    %262 = vmatmul.f32.gmra.mxu0 %v199
    %v263 = vpop.f32.mrf.mxu0
    %v264 = vadd.f32 %v186, %v263
    %265 = vmatmul.f32.gmra.mxu0 %v202
    %v266 = vpop.f32.mrf.mxu0
    %v267 = vadd.f32 %v186, %v266
    %268 = vmatmul.f32.gmra.mxu0 %v205
    %v269 = vpop.f32.mrf.mxu0
    %v270 = vadd.f32 %v186, %v269
    %271 = vmatmul.f32.gmra.mxu0 %v208
    %v272 = vpop.f32.mrf.mxu0
    %v273 = vadd.f32 %v186, %v272
    %274 = vmatmul.f32.gmra.mxu0 %v211
    %v275 = vpop.f32.mrf.mxu0
    %v276 = vadd.f32 %v186, %v275
    %277 = vmatmul.f32.gmra.mxu0 %v214
    %v278 = vpop.f32.mrf.mxu0
    %v279 = vadd.f32 %v186, %v278
    %280 = vmatmul.f32.gmra.mxu0 %v217
    %v281 = vpop.f32.mrf.mxu0
    %v282 = vadd.f32 %v186, %v281
    %283 = vmatmul.f32.gmra.mxu0 %v220
    %v284 = vpop.f32.mrf.mxu0
    %v285 = vadd.f32 %v186, %v284
    %286 = vmatmul.f32.gmra.mxu0 %v223
    %v287 = vpop.f32.mrf.mxu0
    %v288 = vadd.f32 %v186, %v287
    %289 = vmatmul.f32.gmra.mxu0 %v226
    %v290 = vpop.f32.mrf.mxu0
    %v291 = vadd.f32 %v186, %v290
    %292 = vmatmul.f32.gmra.mxu0 %v229
    %v293 = vpop.f32.mrf.mxu0
    %v294 = vadd.f32 %v186, %v293
    %295 = vmatmul.f32.gmra.mxu0 %v232
    %v296 = vpop.f32.mrf.mxu0
    %v297 = vadd.f32 %v186, %v296
    %298 = vmatmul.f32.gmra.mxu0 %v235
    %v299 = vpop.f32.mrf.mxu0
    %v300 = vadd.f32 %v186, %v299
    %301 = vdwg.mxu0
    %302 = vmax.xlane.f32.xlu0 %v255
    %v303 = vpop.xlane.xlu0 %302
    %304 = vmax.xlane.f32.xlu0 %v258
    %v305 = vpop.xlane.xlu0 %304
    %306 = vmax.xlane.f32.xlu0 %v261
    %v307 = vpop.xlane.xlu0 %306
    %308 = vmax.xlane.f32.xlu0 %v264
    %v309 = vpop.xlane.xlu0 %308
    %310 = vmax.xlane.f32.xlu0 %v267
    %v311 = vpop.xlane.xlu0 %310
    %312 = vmax.xlane.f32.xlu0 %v270
    %v313 = vpop.xlane.xlu0 %312
    %314 = vmax.xlane.f32.xlu0 %v273
    %v315 = vpop.xlane.xlu0 %314
    %316 = vmax.xlane.f32.xlu0 %v276
    %v317 = vpop.xlane.xlu0 %316
    %318 = vmax.xlane.f32.xlu0 %v279
    %v319 = vpop.xlane.xlu0 %318
    %320 = vmax.xlane.f32.xlu0 %v282
    %v321 = vpop.xlane.xlu0 %320
    %322 = vmax.xlane.f32.xlu0 %v285
    %v323 = vpop.xlane.xlu0 %322
    %324 = vmax.xlane.f32.xlu0 %v288
    %v325 = vpop.xlane.xlu0 %324
    %326 = vmax.xlane.f32.xlu0 %v291
    %v327 = vpop.xlane.xlu0 %326
    %328 = vmax.xlane.f32.xlu0 %v294
    %v329 = vpop.xlane.xlu0 %328
    %330 = vmax.xlane.f32.xlu0 %v297
    %v331 = vpop.xlane.xlu0 %330
    %332 = vmax.xlane.f32.xlu0 %v300
    %v333 = vpop.xlane.xlu0 %332
    %v334 = vsub.f32 %v255, %v303
    %v335 = vsub.f32 %v258, %v305
    %v336 = vsub.f32 %v261, %v307
    %v337 = vsub.f32 %v264, %v309
    %v338 = vsub.f32 %v267, %v311
    %v339 = vsub.f32 %v270, %v313
    %v340 = vsub.f32 %v273, %v315
    %v341 = vsub.f32 %v276, %v317
    %v342 = vsub.f32 %v279, %v319
    %v343 = vsub.f32 %v282, %v321
    %v344 = vsub.f32 %v285, %v323
    %v345 = vsub.f32 %v288, %v325
    %v346 = vsub.f32 %v291, %v327
    %v347 = vsub.f32 %v294, %v329
    %v348 = vsub.f32 %v297, %v331
    %v349 = vsub.f32 %v300, %v333
    %v350 = vmul.f32 %v334, 1.442695
    %v351 = vpow.pop %v350
    %v352 = vmul.f32 %v335, 1.442695
    %v353 = vpow.pop %v352
    %v354 = vmul.f32 %v336, 1.442695
    %v355 = vpow.pop %v354
    %v356 = vmul.f32 %v337, 1.442695
    %v357 = vpow.pop %v356
    %v358 = vmul.f32 %v338, 1.442695
    %v359 = vpow.pop %v358
    %v360 = vmul.f32 %v339, 1.442695
    %v361 = vpow.pop %v360
    %v362 = vmul.f32 %v340, 1.442695
    %v363 = vpow.pop %v362
    %v364 = vmul.f32 %v341, 1.442695
    %v365 = vpow.pop %v364
    %v366 = vmul.f32 %v342, 1.442695
    %v367 = vpow.pop %v366
    %v368 = vmul.f32 %v343, 1.442695
    %v369 = vpow.pop %v368
    %v370 = vmul.f32 %v344, 1.442695
    %v371 = vpow.pop %v370
    %v372 = vmul.f32 %v345, 1.442695
    %v373 = vpow.pop %v372
    %v374 = vmul.f32 %v346, 1.442695
    %v375 = vpow.pop %v374
    %v376 = vmul.f32 %v347, 1.442695
    %v377 = vpow.pop %v376
    %v378 = vmul.f32 %v348, 1.442695
    %v379 = vpow.pop %v378
    %v380 = vmul.f32 %v349, 1.442695
    %v381 = vpow.pop %v380
    %382 = vadd.xlane.f32.xlu0 %v351
    %v383 = vpop.xlane.xlu0 %382
    %384 = vadd.xlane.f32.xlu0 %v353
    %v385 = vpop.xlane.xlu0 %384
    %386 = vadd.xlane.f32.xlu0 %v355
    %v387 = vpop.xlane.xlu0 %386
    %388 = vadd.xlane.f32.xlu0 %v357
    %v389 = vpop.xlane.xlu0 %388
    %390 = vadd.xlane.f32.xlu0 %v359
    %v391 = vpop.xlane.xlu0 %390
    %392 = vadd.xlane.f32.xlu0 %v361
    %v393 = vpop.xlane.xlu0 %392
    %394 = vadd.xlane.f32.xlu0 %v363
    %v395 = vpop.xlane.xlu0 %394
    %396 = vadd.xlane.f32.xlu0 %v365
    %v397 = vpop.xlane.xlu0 %396
    %398 = vadd.xlane.f32.xlu0 %v367
    %v399 = vpop.xlane.xlu0 %398
    %400 = vadd.xlane.f32.xlu0 %v369
    %v401 = vpop.xlane.xlu0 %400
    %402 = vadd.xlane.f32.xlu0 %v371
    %v403 = vpop.xlane.xlu0 %402
    %404 = vadd.xlane.f32.xlu0 %v373
    %v405 = vpop.xlane.xlu0 %404
    %406 = vadd.xlane.f32.xlu0 %v375
    %v407 = vpop.xlane.xlu0 %406
    %408 = vadd.xlane.f32.xlu0 %v377
    %v409 = vpop.xlane.xlu0 %408
    %410 = vadd.xlane.f32.xlu0 %v379
    %v411 = vpop.xlane.xlu0 %410
    %412 = vadd.xlane.f32.xlu0 %v381
    %v413 = vpop.xlane.xlu0 %412
    %v414 = vrcp.pop %v383
    %v415 = vmul.f32 %v383, %v414
    %v416 = vsub.f32 1.0, %v415
    %v417 = vmul.f32 %v414, %v416
    %v418 = vadd.f32 %v414, %v417
    %vm419 = vweird.f32 %v383
    %vm420 = vweird.f32 %v414
    %vm421 = vmor %vm419, %vm420
    %v422 = vsel %vm421, %v414, %v418
    %v423 = vand.u32 2147483647, %v383
    %vm424 = vcmp.eq.f32.partialorder %v423, 8.507059e+37
    %v425 = vand.u32 %v383, 2147483648
    %v426 = vor.u32 1.1754944e-38, %v425
    %v427 = vsel %vm424, %v426, %v422
    %v428 = vmul.f32 %v351, %v427
    %v429 = vrcp.pop %v385
    %v430 = vmul.f32 %v385, %v429
    %v431 = vsub.f32 1.0, %v430
    %v432 = vmul.f32 %v429, %v431
    %v433 = vadd.f32 %v429, %v432
    %vm434 = vweird.f32 %v385
    %vm435 = vweird.f32 %v429
    %vm436 = vmor %vm434, %vm435
    %v437 = vsel %vm436, %v429, %v433
    %v438 = vand.u32 2147483647, %v385
    %vm439 = vcmp.eq.f32.partialorder %v438, 8.507059e+37
    %v440 = vand.u32 %v385, 2147483648
    %v441 = vor.u32 1.1754944e-38, %v440
    %v442 = vsel %vm439, %v441, %v437
    %v443 = vmul.f32 %v353, %v442
    %v444 = vrcp.pop %v387
    %v445 = vmul.f32 %v387, %v444
    %v446 = vsub.f32 1.0, %v445
    %v447 = vmul.f32 %v444, %v446
    %v448 = vadd.f32 %v444, %v447
    %vm449 = vweird.f32 %v387
    %vm450 = vweird.f32 %v444
    %vm451 = vmor %vm449, %vm450
    %v452 = vsel %vm451, %v444, %v448
    %v453 = vand.u32 2147483647, %v387
    %vm454 = vcmp.eq.f32.partialorder %v453, 8.507059e+37
    %v455 = vand.u32 %v387, 2147483648
    %v456 = vor.u32 1.1754944e-38, %v455
    %v457 = vsel %vm454, %v456, %v452
    %v458 = vmul.f32 %v355, %v457
    %v459 = vrcp.pop %v389
    %v460 = vmul.f32 %v389, %v459
    %v461 = vsub.f32 1.0, %v460
    %v462 = vmul.f32 %v459, %v461
    %v463 = vadd.f32 %v459, %v462
    %vm464 = vweird.f32 %v389
    %vm465 = vweird.f32 %v459
    %vm466 = vmor %vm464, %vm465
    %v467 = vsel %vm466, %v459, %v463
    %v468 = vand.u32 2147483647, %v389
    %vm469 = vcmp.eq.f32.partialorder %v468, 8.507059e+37
    %v470 = vand.u32 %v389, 2147483648
    %v471 = vor.u32 1.1754944e-38, %v470
    %v472 = vsel %vm469, %v471, %v467
    %v473 = vmul.f32 %v357, %v472
    %v474 = vrcp.pop %v391
    %v475 = vmul.f32 %v391, %v474
    %v476 = vsub.f32 1.0, %v475
    %v477 = vmul.f32 %v474, %v476
    %v478 = vadd.f32 %v474, %v477
    %vm479 = vweird.f32 %v391
    %vm480 = vweird.f32 %v474
    %vm481 = vmor %vm479, %vm480
    %v482 = vsel %vm481, %v474, %v478
    %v483 = vand.u32 2147483647, %v391
    %vm484 = vcmp.eq.f32.partialorder %v483, 8.507059e+37
    %v485 = vand.u32 %v391, 2147483648
    %v486 = vor.u32 1.1754944e-38, %v485
    %v487 = vsel %vm484, %v486, %v482
    %v488 = vmul.f32 %v359, %v487
    %v489 = vrcp.pop %v393
    %v490 = vmul.f32 %v393, %v489
    %v491 = vsub.f32 1.0, %v490
    %v492 = vmul.f32 %v489, %v491
    %v493 = vadd.f32 %v489, %v492
    %vm494 = vweird.f32 %v393
    %vm495 = vweird.f32 %v489
    %vm496 = vmor %vm494, %vm495
    %v497 = vsel %vm496, %v489, %v493
    %v498 = vand.u32 2147483647, %v393
    %vm499 = vcmp.eq.f32.partialorder %v498, 8.507059e+37
    %v500 = vand.u32 %v393, 2147483648
    %v501 = vor.u32 1.1754944e-38, %v500
    %v502 = vsel %vm499, %v501, %v497
    %v503 = vmul.f32 %v361, %v502
    %v504 = vrcp.pop %v395
    %v505 = vmul.f32 %v395, %v504
    %v506 = vsub.f32 1.0, %v505
    %v507 = vmul.f32 %v504, %v506
    %v508 = vadd.f32 %v504, %v507
    %vm509 = vweird.f32 %v395
    %vm510 = vweird.f32 %v504
    %vm511 = vmor %vm509, %vm510
    %v512 = vsel %vm511, %v504, %v508
    %v513 = vand.u32 2147483647, %v395
    %vm514 = vcmp.eq.f32.partialorder %v513, 8.507059e+37
    %v515 = vand.u32 %v395, 2147483648
    %v516 = vor.u32 1.1754944e-38, %v515
    %v517 = vsel %vm514, %v516, %v512
    %v518 = vmul.f32 %v363, %v517
    %v519 = vrcp.pop %v397
    %v520 = vmul.f32 %v397, %v519
    %v521 = vsub.f32 1.0, %v520
    %v522 = vmul.f32 %v519, %v521
    %v523 = vadd.f32 %v519, %v522
    %vm524 = vweird.f32 %v397
    %vm525 = vweird.f32 %v519
    %vm526 = vmor %vm524, %vm525
    %v527 = vsel %vm526, %v519, %v523
    %v528 = vand.u32 2147483647, %v397
    %vm529 = vcmp.eq.f32.partialorder %v528, 8.507059e+37
    %v530 = vand.u32 %v397, 2147483648
    %v531 = vor.u32 1.1754944e-38, %v530
    %v532 = vsel %vm529, %v531, %v527
    %v533 = vmul.f32 %v365, %v532
    %v534 = vrcp.pop %v399
    %v535 = vmul.f32 %v399, %v534
    %v536 = vsub.f32 1.0, %v535
    %v537 = vmul.f32 %v534, %v536
    %v538 = vadd.f32 %v534, %v537
    %vm539 = vweird.f32 %v399
    %vm540 = vweird.f32 %v534
    %vm541 = vmor %vm539, %vm540
    %v542 = vsel %vm541, %v534, %v538
    %v543 = vand.u32 2147483647, %v399
    %vm544 = vcmp.eq.f32.partialorder %v543, 8.507059e+37
    %v545 = vand.u32 %v399, 2147483648
    %v546 = vor.u32 1.1754944e-38, %v545
    %v547 = vsel %vm544, %v546, %v542
    %v548 = vmul.f32 %v367, %v547
    %v549 = vrcp.pop %v401
    %v550 = vmul.f32 %v401, %v549
    %v551 = vsub.f32 1.0, %v550
    %v552 = vmul.f32 %v549, %v551
    %v553 = vadd.f32 %v549, %v552
    %vm554 = vweird.f32 %v401
    %vm555 = vweird.f32 %v549
    %vm556 = vmor %vm554, %vm555
    %v557 = vsel %vm556, %v549, %v553
    %v558 = vand.u32 2147483647, %v401
    %vm559 = vcmp.eq.f32.partialorder %v558, 8.507059e+37
    %v560 = vand.u32 %v401, 2147483648
    %v561 = vor.u32 1.1754944e-38, %v560
    %v562 = vsel %vm559, %v561, %v557
    %v563 = vmul.f32 %v369, %v562
    %v564 = vrcp.pop %v403
    %v565 = vmul.f32 %v403, %v564
    %v566 = vsub.f32 1.0, %v565
    %v567 = vmul.f32 %v564, %v566
    %v568 = vadd.f32 %v564, %v567
    %vm569 = vweird.f32 %v403
    %vm570 = vweird.f32 %v564
    %vm571 = vmor %vm569, %vm570
    %v572 = vsel %vm571, %v564, %v568
    %v573 = vand.u32 2147483647, %v403
    %vm574 = vcmp.eq.f32.partialorder %v573, 8.507059e+37
    %v575 = vand.u32 %v403, 2147483648
    %v576 = vor.u32 1.1754944e-38, %v575
    %v577 = vsel %vm574, %v576, %v572
    %v578 = vmul.f32 %v371, %v577
    %v579 = vrcp.pop %v405
    %v580 = vmul.f32 %v405, %v579
    %v581 = vsub.f32 1.0, %v580
    %v582 = vmul.f32 %v579, %v581
    %v583 = vadd.f32 %v579, %v582
    %vm584 = vweird.f32 %v405
    %vm585 = vweird.f32 %v579
    %vm586 = vmor %vm584, %vm585
    %v587 = vsel %vm586, %v579, %v583
    %v588 = vand.u32 2147483647, %v405
    %vm589 = vcmp.eq.f32.partialorder %v588, 8.507059e+37
    %v590 = vand.u32 %v405, 2147483648
    %v591 = vor.u32 1.1754944e-38, %v590
    %v592 = vsel %vm589, %v591, %v587
    %v593 = vmul.f32 %v373, %v592
    %v594 = vrcp.pop %v407
    %v595 = vmul.f32 %v407, %v594
    %v596 = vsub.f32 1.0, %v595
    %v597 = vmul.f32 %v594, %v596
    %v598 = vadd.f32 %v594, %v597
    %vm599 = vweird.f32 %v407
    %vm600 = vweird.f32 %v594
    %vm601 = vmor %vm599, %vm600
    %v602 = vsel %vm601, %v594, %v598
    %v603 = vand.u32 2147483647, %v407
    %vm604 = vcmp.eq.f32.partialorder %v603, 8.507059e+37
    %v605 = vand.u32 %v407, 2147483648
    %v606 = vor.u32 1.1754944e-38, %v605
    %v607 = vsel %vm604, %v606, %v602
    %v608 = vmul.f32 %v375, %v607
    %v609 = vrcp.pop %v409
    %v610 = vmul.f32 %v409, %v609
    %v611 = vsub.f32 1.0, %v610
    %v612 = vmul.f32 %v609, %v611
    %v613 = vadd.f32 %v609, %v612
    %vm614 = vweird.f32 %v409
    %vm615 = vweird.f32 %v609
    %vm616 = vmor %vm614, %vm615
    %v617 = vsel %vm616, %v609, %v613
    %v618 = vand.u32 2147483647, %v409
    %vm619 = vcmp.eq.f32.partialorder %v618, 8.507059e+37
    %v620 = vand.u32 %v409, 2147483648
    %v621 = vor.u32 1.1754944e-38, %v620
    %v622 = vsel %vm619, %v621, %v617
    %v623 = vmul.f32 %v377, %v622
    %v624 = vrcp.pop %v411
    %v625 = vmul.f32 %v411, %v624
    %v626 = vsub.f32 1.0, %v625
    %v627 = vmul.f32 %v624, %v626
    %v628 = vadd.f32 %v624, %v627
    %vm629 = vweird.f32 %v411
    %vm630 = vweird.f32 %v624
    %vm631 = vmor %vm629, %vm630
    %v632 = vsel %vm631, %v624, %v628
    %v633 = vand.u32 2147483647, %v411
    %vm634 = vcmp.eq.f32.partialorder %v633, 8.507059e+37
    %v635 = vand.u32 %v411, 2147483648
    %v636 = vor.u32 1.1754944e-38, %v635
    %v637 = vsel %vm634, %v636, %v632
    %v638 = vmul.f32 %v379, %v637
    %v639 = vrcp.pop %v413
    %v640 = vmul.f32 %v413, %v639
    %v641 = vsub.f32 1.0, %v640
    %v642 = vmul.f32 %v639, %v641
    %v643 = vadd.f32 %v639, %v642
    %vm644 = vweird.f32 %v413
    %vm645 = vweird.f32 %v639
    %vm646 = vmor %vm644, %vm645
    %v647 = vsel %vm646, %v639, %v643
    %v648 = vand.u32 2147483647, %v413
    %vm649 = vcmp.eq.f32.partialorder %v648, 8.507059e+37
    %v650 = vand.u32 %v413, 2147483648
    %v651 = vor.u32 1.1754944e-38, %v650
    %v652 = vsel %vm649, %v651, %v647
    %v653 = vmul.f32 %v381, %v652
    %v654 = vlaneseq
    %v655 = vand.u32 %v654, 127
    %vm656 = vcmp.eq.f32.partialorder %v255, %v303
    %vm657 = vcmp.eq.f32.partialorder %v258, %v305
    %vm658 = vcmp.eq.f32.partialorder %v261, %v307
    %vm659 = vcmp.eq.f32.partialorder %v264, %v309
    %vm660 = vcmp.eq.f32.partialorder %v267, %v311
    %vm661 = vcmp.eq.f32.partialorder %v270, %v313
    %vm662 = vcmp.eq.f32.partialorder %v273, %v315
    %vm663 = vcmp.eq.f32.partialorder %v276, %v317
    %vm664 = vcmp.eq.f32.partialorder %v279, %v319
    %vm665 = vcmp.eq.f32.partialorder %v282, %v321
    %vm666 = vcmp.eq.f32.partialorder %v285, %v323
    %vm667 = vcmp.eq.f32.partialorder %v288, %v325
    %vm668 = vcmp.eq.f32.partialorder %v291, %v327
    %vm669 = vcmp.eq.f32.partialorder %v294, %v329
    %vm670 = vcmp.eq.f32.partialorder %v297, %v331
    %vm671 = vcmp.eq.f32.partialorder %v300, %v333
    %v672 = vsel %vm656, %v655, 128
    %v673 = vsel %vm657, %v655, 128
    %v674 = vsel %vm658, %v655, 128
    %v675 = vsel %vm659, %v655, 128
    %v676 = vsel %vm660, %v655, 128
    %v677 = vsel %vm661, %v655, 128
    %v678 = vsel %vm662, %v655, 128
    %v679 = vsel %vm663, %v655, 128
    %v680 = vsel %vm664, %v655, 128
    %v681 = vsel %vm665, %v655, 128
    %v682 = vsel %vm666, %v655, 128
    %v683 = vsel %vm667, %v655, 128
    %v684 = vsel %vm668, %v655, 128
    %v685 = vsel %vm669, %v655, 128
    %v686 = vsel %vm670, %v655, 128
    %v687 = vsel %vm671, %v655, 128
    %v688 = vand.u32 %v672, 65535
    %v689 = vshra.s32 %v672, 16
    %v690 = vcvt.s32.f32 %v688
    %v691 = vcvt.s32.f32 %v689
    %692 = vmin.xlane.f32.xlu0 %v691
    %v693 = vpop.xlane.xlu0 %692
    %vm694 = vcmp.eq.f32.partialorder %v691, %v693
    %v695 = vsel %vm694, %v690, inf
    %696 = vmin.xlane.f32.xlu0 %v695
    %v697 = vpop.xlane.xlu0 %696
    %v698 = vcvt.f32.s32 %v697
    %v699 = vcvt.f32.s32 %v693
    %v700 = vshll.u32 %v699, 16
    %v701 = vadd.s32 %v700, %v698
    %v702 = vand.u32 %v673, 65535
    %v703 = vshra.s32 %v673, 16
    %v704 = vcvt.s32.f32 %v702
    %v705 = vcvt.s32.f32 %v703
    %706 = vmin.xlane.f32.xlu0 %v705
    %v707 = vpop.xlane.xlu0 %706
    %vm708 = vcmp.eq.f32.partialorder %v705, %v707
    %v709 = vsel %vm708, %v704, inf
    %710 = vmin.xlane.f32.xlu0 %v709
    %v711 = vpop.xlane.xlu0 %710
    %v712 = vcvt.f32.s32 %v711
    %v713 = vcvt.f32.s32 %v707
    %v714 = vshll.u32 %v713, 16
    %v715 = vadd.s32 %v714, %v712
    %v716 = vand.u32 %v674, 65535
    %v717 = vshra.s32 %v674, 16
    %v718 = vcvt.s32.f32 %v716
    %v719 = vcvt.s32.f32 %v717
    %720 = vmin.xlane.f32.xlu0 %v719
    %v721 = vpop.xlane.xlu0 %720
    %vm722 = vcmp.eq.f32.partialorder %v719, %v721
    %v723 = vsel %vm722, %v718, inf
    %724 = vmin.xlane.f32.xlu0 %v723
    %v725 = vpop.xlane.xlu0 %724
    %v726 = vcvt.f32.s32 %v725
    %v727 = vcvt.f32.s32 %v721
    %v728 = vshll.u32 %v727, 16
    %v729 = vadd.s32 %v728, %v726
    %v730 = vand.u32 %v675, 65535
    %v731 = vshra.s32 %v675, 16
    %v732 = vcvt.s32.f32 %v730
    %v733 = vcvt.s32.f32 %v731
    %734 = vmin.xlane.f32.xlu0 %v733
    %v735 = vpop.xlane.xlu0 %734
    %vm736 = vcmp.eq.f32.partialorder %v733, %v735
    %v737 = vsel %vm736, %v732, inf
    %738 = vmin.xlane.f32.xlu0 %v737
    %v739 = vpop.xlane.xlu0 %738
    %v740 = vcvt.f32.s32 %v739
    %v741 = vcvt.f32.s32 %v735
    %v742 = vshll.u32 %v741, 16
    %v743 = vadd.s32 %v742, %v740
    %v744 = vand.u32 %v676, 65535
    %v745 = vshra.s32 %v676, 16
    %v746 = vcvt.s32.f32 %v744
    %v747 = vcvt.s32.f32 %v745
    %748 = vmin.xlane.f32.xlu0 %v747
    %v749 = vpop.xlane.xlu0 %748
    %vm750 = vcmp.eq.f32.partialorder %v747, %v749
    %v751 = vsel %vm750, %v746, inf
    %752 = vmin.xlane.f32.xlu0 %v751
    %v753 = vpop.xlane.xlu0 %752
    %v754 = vcvt.f32.s32 %v753
    %v755 = vcvt.f32.s32 %v749
    %v756 = vshll.u32 %v755, 16
    %v757 = vadd.s32 %v756, %v754
    %v758 = vand.u32 %v677, 65535
    %v759 = vshra.s32 %v677, 16
    %v760 = vcvt.s32.f32 %v758
    %v761 = vcvt.s32.f32 %v759
    %762 = vmin.xlane.f32.xlu0 %v761
    %v763 = vpop.xlane.xlu0 %762
    %vm764 = vcmp.eq.f32.partialorder %v761, %v763
    %v765 = vsel %vm764, %v760, inf
    %766 = vmin.xlane.f32.xlu0 %v765
    %v767 = vpop.xlane.xlu0 %766
    %v768 = vcvt.f32.s32 %v767
    %v769 = vcvt.f32.s32 %v763
    %v770 = vshll.u32 %v769, 16
    %v771 = vadd.s32 %v770, %v768
    %v772 = vand.u32 %v678, 65535
    %v773 = vshra.s32 %v678, 16
    %v774 = vcvt.s32.f32 %v772
    %v775 = vcvt.s32.f32 %v773
    %776 = vmin.xlane.f32.xlu0 %v775
    %v777 = vpop.xlane.xlu0 %776
    %vm778 = vcmp.eq.f32.partialorder %v775, %v777
    %v779 = vsel %vm778, %v774, inf
    %780 = vmin.xlane.f32.xlu0 %v779
    %v781 = vpop.xlane.xlu0 %780
    %v782 = vcvt.f32.s32 %v781
    %v783 = vcvt.f32.s32 %v777
    %v784 = vshll.u32 %v783, 16
    %v785 = vadd.s32 %v784, %v782
    %v786 = vand.u32 %v679, 65535
    %v787 = vshra.s32 %v679, 16
    %v788 = vcvt.s32.f32 %v786
    %v789 = vcvt.s32.f32 %v787
    %790 = vmin.xlane.f32.xlu0 %v789
    %v791 = vpop.xlane.xlu0 %790
    %vm792 = vcmp.eq.f32.partialorder %v789, %v791
    %v793 = vsel %vm792, %v788, inf
    %794 = vmin.xlane.f32.xlu0 %v793
    %v795 = vpop.xlane.xlu0 %794
    %v796 = vcvt.f32.s32 %v795
    %v797 = vcvt.f32.s32 %v791
    %v798 = vshll.u32 %v797, 16
    %v799 = vadd.s32 %v798, %v796
    %v800 = vand.u32 %v680, 65535
    %v801 = vshra.s32 %v680, 16
    %v802 = vcvt.s32.f32 %v800
    %v803 = vcvt.s32.f32 %v801
    %804 = vmin.xlane.f32.xlu0 %v803
    %v805 = vpop.xlane.xlu0 %804
    %vm806 = vcmp.eq.f32.partialorder %v803, %v805
    %v807 = vsel %vm806, %v802, inf
    %808 = vmin.xlane.f32.xlu0 %v807
    %v809 = vpop.xlane.xlu0 %808
    %v810 = vcvt.f32.s32 %v809
    %v811 = vcvt.f32.s32 %v805
    %v812 = vshll.u32 %v811, 16
    %v813 = vadd.s32 %v812, %v810
    %v814 = vand.u32 %v681, 65535
    %v815 = vshra.s32 %v681, 16
    %v816 = vcvt.s32.f32 %v814
    %v817 = vcvt.s32.f32 %v815
    %818 = vmin.xlane.f32.xlu0 %v817
    %v819 = vpop.xlane.xlu0 %818
    %vm820 = vcmp.eq.f32.partialorder %v817, %v819
    %v821 = vsel %vm820, %v816, inf
    %822 = vmin.xlane.f32.xlu0 %v821
    %v823 = vpop.xlane.xlu0 %822
    %v824 = vcvt.f32.s32 %v823
    %v825 = vcvt.f32.s32 %v819
    %v826 = vshll.u32 %v825, 16
    %v827 = vadd.s32 %v826, %v824
    %v828 = vand.u32 %v682, 65535
    %v829 = vshra.s32 %v682, 16
    %v830 = vcvt.s32.f32 %v828
    %v831 = vcvt.s32.f32 %v829
    %832 = vmin.xlane.f32.xlu0 %v831
    %v833 = vpop.xlane.xlu0 %832
    %vm834 = vcmp.eq.f32.partialorder %v831, %v833
    %v835 = vsel %vm834, %v830, inf
    %836 = vmin.xlane.f32.xlu0 %v835
    %v837 = vpop.xlane.xlu0 %836
    %v838 = vcvt.f32.s32 %v837
    %v839 = vcvt.f32.s32 %v833
    %v840 = vshll.u32 %v839, 16
    %v841 = vadd.s32 %v840, %v838
    %v842 = vand.u32 %v683, 65535
    %v843 = vshra.s32 %v683, 16
    %v844 = vcvt.s32.f32 %v842
    %v845 = vcvt.s32.f32 %v843
    %846 = vmin.xlane.f32.xlu0 %v845
    %v847 = vpop.xlane.xlu0 %846
    %vm848 = vcmp.eq.f32.partialorder %v845, %v847
    %v849 = vsel %vm848, %v844, inf
    %850 = vmin.xlane.f32.xlu0 %v849
    %v851 = vpop.xlane.xlu0 %850
    %v852 = vcvt.f32.s32 %v851
    %v853 = vcvt.f32.s32 %v847
    %v854 = vshll.u32 %v853, 16
    %v855 = vadd.s32 %v854, %v852
    %v856 = vand.u32 %v684, 65535
    %v857 = vshra.s32 %v684, 16
    %v858 = vcvt.s32.f32 %v856
    %v859 = vcvt.s32.f32 %v857
    %860 = vmin.xlane.f32.xlu0 %v859
    %v861 = vpop.xlane.xlu0 %860
    %vm862 = vcmp.eq.f32.partialorder %v859, %v861
    %v863 = vsel %vm862, %v858, inf
    %864 = vmin.xlane.f32.xlu0 %v863
    %v865 = vpop.xlane.xlu0 %864
    %v866 = vcvt.f32.s32 %v865
    %v867 = vcvt.f32.s32 %v861
    %v868 = vshll.u32 %v867, 16
    %v869 = vadd.s32 %v868, %v866
    %v870 = vand.u32 %v685, 65535
    %v871 = vshra.s32 %v685, 16
    %v872 = vcvt.s32.f32 %v870
    %v873 = vcvt.s32.f32 %v871
    %874 = vmin.xlane.f32.xlu0 %v873
    %v875 = vpop.xlane.xlu0 %874
    %vm876 = vcmp.eq.f32.partialorder %v873, %v875
    %v877 = vsel %vm876, %v872, inf
    %878 = vmin.xlane.f32.xlu0 %v877
    %v879 = vpop.xlane.xlu0 %878
    %v880 = vcvt.f32.s32 %v879
    %v881 = vcvt.f32.s32 %v875
    %v882 = vshll.u32 %v881, 16
    %v883 = vadd.s32 %v882, %v880
    %v884 = vand.u32 %v686, 65535
    %v885 = vshra.s32 %v686, 16
    %v886 = vcvt.s32.f32 %v884
    %v887 = vcvt.s32.f32 %v885
    %888 = vmin.xlane.f32.xlu0 %v887
    %v889 = vpop.xlane.xlu0 %888
    %vm890 = vcmp.eq.f32.partialorder %v887, %v889
    %v891 = vsel %vm890, %v886, inf
    %892 = vmin.xlane.f32.xlu0 %v891
    %v893 = vpop.xlane.xlu0 %892
    %v894 = vcvt.f32.s32 %v893
    %v895 = vcvt.f32.s32 %v889
    %v896 = vshll.u32 %v895, 16
    %v897 = vadd.s32 %v896, %v894
    %v898 = vand.u32 %v687, 65535
    %v899 = vshra.s32 %v687, 16
    %v900 = vcvt.s32.f32 %v898
    %v901 = vcvt.s32.f32 %v899
    %902 = vmin.xlane.f32.xlu0 %v901
    %v903 = vpop.xlane.xlu0 %902
    %vm904 = vcmp.eq.f32.partialorder %v901, %v903
    %v905 = vsel %vm904, %v900, inf
    %906 = vmin.xlane.f32.xlu0 %v905
    %v907 = vpop.xlane.xlu0 %906
    %v908 = vcvt.f32.s32 %v907
    %v909 = vcvt.f32.s32 %v903
    %v910 = vshll.u32 %v909, 16
    %v911 = vadd.s32 %v910, %v908
    %v912 = vcvt.s32.f32 %v701
    %v913 = vcvt.s32.f32 %v715
    %v914 = vcvt.s32.f32 %v729
    %v915 = vcvt.s32.f32 %v743
    %v916 = vcvt.s32.f32 %v757
    %v917 = vcvt.s32.f32 %v771
    %v918 = vcvt.s32.f32 %v785
    %v919 = vcvt.s32.f32 %v799
    %v920 = vcvt.s32.f32 %v813
    %v921 = vcvt.s32.f32 %v827
    %v922 = vcvt.s32.f32 %v841
    %v923 = vcvt.s32.f32 %v855
    %v924 = vcvt.s32.f32 %v869
    %v925 = vcvt.s32.f32 %v883
    %v926 = vcvt.s32.f32 %v897
    %v927 = vcvt.s32.f32 %v911
    %vm928 = vcmp.eq.s32.totalorder %v655, 2
    %v929 = vsel %vm928, %v912, %v428
    %v930 = vsel %vm928, %v913, %v443
    %v931 = vsel %vm928, %v914, %v458
    %v932 = vsel %vm928, %v915, %v473
    %v933 = vsel %vm928, %v916, %v488
    %v934 = vsel %vm928, %v917, %v503
    %v935 = vsel %vm928, %v918, %v518
    %v936 = vsel %vm928, %v919, %v533
    %v937 = vsel %vm928, %v920, %v548
    %v938 = vsel %vm928, %v921, %v563
    %v939 = vsel %vm928, %v922, %v578
    %v940 = vsel %vm928, %v923, %v593
    %v941 = vsel %vm928, %v924, %v608
    %v942 = vsel %vm928, %v925, %v623
    %v943 = vsel %vm928, %v926, %v638
    %v944 = vsel %vm928, %v927, %v653
    %945 = vxpose.xlu0.b32.start [1/16] %v929, 128
    %946 = vxpose.xlu0.b32.cont [2/16] %v930, 128
    %947 = vxpose.xlu0.b32.cont [3/16] %v931, 128
    %948 = vxpose.xlu0.b32.cont [4/16] %v932, 128
    %949 = vxpose.xlu0.b32.cont [5/16] %v933, 128
    %950 = vxpose.xlu0.b32.cont [6/16] %v934, 128
    %951 = vxpose.xlu0.b32.cont [7/16] %v935, 128
    %952 = vxpose.xlu0.b32.cont [8/16] %v936, 128
    %953 = vxpose.xlu0.b32.cont [9/16] %v937, 128
    %954 = vxpose.xlu0.b32.cont [10/16] %v938, 128
    %955 = vxpose.xlu0.b32.cont [11/16] %v939, 128
    %956 = vxpose.xlu0.b32.cont [12/16] %v940, 128
    %957 = vxpose.xlu0.b32.cont [13/16] %v941, 128
    %958 = vxpose.xlu0.b32.cont [14/16] %v942, 128
    %959 = vxpose.xlu0.b32.cont [15/16] %v943, 128
    %960 = vxpose.xlu0.b32.end [16/16] %v944, 128
    %v961 = vpop.trf.xlu0
    %v962 = vpop.trf.xlu0
    %v963 = vpop.trf.xlu0
    %v964 = vpop.trf.xlu0
    %v965 = vpop.trf.xlu0
    %v966 = vpop.trf.xlu0
    %v967 = vpop.trf.xlu0
    %v968 = vpop.trf.xlu0
    %v969 = vpop.trf.xlu0
    %v970 = vpop.trf.xlu0
    %v971 = vpop.trf.xlu0
    %v972 = vpop.trf.xlu0
    %v973 = vpop.trf.xlu0
    %v974 = vpop.trf.xlu0
    %v975 = vpop.trf.xlu0
    %v976 = vpop.trf.xlu0
    %977 = vst [vmem:[#allocation2] sm:$0xff] %v961
    // Predicated region
    $region22: #{tpu_custom_call.1} parent=1 // pred_check
      _
    $region23: #{tpu_custom_call.1} parent=1 // pred_check_branch
      %979 = sbr.rel (0) target = $region25
    $region24: #{tpu_custom_call.1} parent=1 // pred_region
      %981 = vsyncadd [#allocation3], 0
      %s983 = sshll.u32 [#allocation2], 4
      %s984 = int_to_ptr.vmem [resolvable:$true] %s983
      %s985 = sshll.u32 %s5, 4
      %s986 = int_to_ptr.hbm [resolvable:$true] %s985
      %988 = dma.vmem_to_hbm [thread:$0]  %s984, 128, %s986, [#allocation3]
    $region25: #{tpu_custom_call.1} parent=1 // pred_fallthru
      _
    // Predicated region
    $region26: #{tpu_custom_call.1} parent=1 // pred_check
      _
    $region27: #{tpu_custom_call.1} parent=1 // pred_check_branch
      %990 = sbr.rel (0) target = $region29
    $region28: #{tpu_custom_call.1} parent=1 // pred_region
      %992 = dma.done [#allocation3], 128
    $region29: #{tpu_custom_call.1} parent=1 // pred_fallthru
      _
    %993 = vsyncpa [#allocation3], 1

</llo_original>
